<compile_context>
chip_gen: v5e
topology: v5e:2x2
jax: 0.10.0
libtpu: 0.0.40
codegen_flags: <defaults>
</compile_context>

<pallas_src>
import jax
import jax.numpy as jnp
from jax import lax
from jax.experimental import pallas as pl
from jax.experimental.pallas import tpu as pltpu


def _round_up(x, m):
    return ((x + m - 1) // m) * m


def _fc_relu_kernel_noacc(x_ref, w_ref, b_ref, o_ref):
    # Fast path: full K in one tile. x_ref: (TB, TK), w_ref: (TN, TK) torch
    # layout, b_ref: (1, TN) f32, o_ref: (TB, TN).
    y = lax.dot_general(
        x_ref[...], w_ref[...],
        dimension_numbers=(((1,), (1,)), ((), ())),   # x @ w.T, no HBM transpose
        preferred_element_type=jnp.float32)
    y = y + b_ref[...]                                # bias in f32
    o_ref[...] = jnp.maximum(y, 0.0).astype(o_ref.dtype)   # ReLU


def _fc_relu_kernel_acc(x_ref, w_ref, b_ref, o_ref, acc_ref):
    # K-tiled path. acc_ref: (TB, TN) f32 scratch, resident across the K axis.
    k = pl.program_id(2)

    @pl.when(k == 0)
    def _():
        acc_ref[...] = jnp.zeros_like(acc_ref)

    acc_ref[...] += lax.dot_general(
        x_ref[...], w_ref[...],
        dimension_numbers=(((1,), (1,)), ((), ())),
        preferred_element_type=jnp.float32)

    @pl.when(k == pl.num_programs(2) - 1)
    def _():
        y = acc_ref[...] + b_ref[...]
        o_ref[...] = jnp.maximum(y, 0.0).astype(o_ref.dtype)


def fc_layer(x, w, b, *, tile_b=256, tile_n=256, tile_k=1024, compute_dtype=None):
    """ReLU(x @ w.T + b).

    x: (B, Din); w: (Dout, Din) torch nn.Linear layout; b: (Dout,).
    compute_dtype: optionally cast x/w (e.g. jnp.bfloat16 on v6e/v7x);
    accumulation stays f32.
    """
    B, Din = x.shape
    Dout, Din_w = w.shape
    assert Din == Din_w, "weight/input dim mismatch"
    out_dtype = x.dtype

    if compute_dtype is not None:
        x = x.astype(compute_dtype)
        w = w.astype(compute_dtype)

    # Clamp tiles to the (aligned) problem size so tiny layers don't over-pad,
    # while keeping sublane (8) / lane (128) alignment and lane-dense outputs.
    tb = min(tile_b, _round_up(B, 8))
    tn = min(tile_n, _round_up(Dout, 128))
    tk = min(tile_k, _round_up(Din, 128))

    Bp = _round_up(B, tb)
    Np = _round_up(Dout, tn)
    Kp = _round_up(Din, tk)

    # Zero-padding is semantics-preserving: extra K contributes 0 to the dot,
    # extra N columns / B rows are sliced off below. No-op for aligned shapes.
    if (Bp, Kp) != (B, Din):
        x = jnp.pad(x, ((0, Bp - B), (0, Kp - Din)))
    if (Np, Kp) != (Dout, Din):
        w = jnp.pad(w, ((0, Np - Dout), (0, Kp - Din)))
    if Np != Dout:
        b = jnp.pad(b, (0, Np - Dout))
    b2 = b.reshape(1, Np).astype(jnp.float32)

    n_k = Kp // tk

    if n_k == 1:
        # Fast path: no K reduction axis, no f32 scratch, fully parallel grid.
        grid = (Bp // tb, Np // tn)
        out = pl.pallas_call(
            _fc_relu_kernel_noacc,
            out_shape=jax.ShapeDtypeStruct((Bp, Np), out_dtype),
            grid_spec=pltpu.PrefetchScalarGridSpec(
                num_scalar_prefetch=0,
                grid=grid,
                in_specs=[
                    pl.BlockSpec((tb, tk), lambda i, j: (i, 0)),   # x tile
                    pl.BlockSpec((tn, tk), lambda i, j: (j, 0)),   # w tile (torch layout)
                    pl.BlockSpec((1, tn), lambda i, j: (0, j)),    # bias tile
                ],
                out_specs=pl.BlockSpec((tb, tn), lambda i, j: (i, j)),
            ),
            compiler_params=pltpu.CompilerParams(
                dimension_semantics=("parallel", "parallel")),
        )(x, w, b2)
    else:
        # K-tiled path with f32 accumulator resident across the K axis (last,
        # "arbitrary"); B and N axes are "parallel" (megacore sharding).
        grid = (Bp // tb, Np // tn, n_k)
        out = pl.pallas_call(
            _fc_relu_kernel_acc,
            out_shape=jax.ShapeDtypeStruct((Bp, Np), out_dtype),
            grid_spec=pltpu.PrefetchScalarGridSpec(
                num_scalar_prefetch=0,
                grid=grid,
                in_specs=[
                    pl.BlockSpec((tb, tk), lambda i, j, k: (i, k)),   # x tile
                    pl.BlockSpec((tn, tk), lambda i, j, k: (j, k)),   # w tile (torch layout)
                    pl.BlockSpec((1, tn), lambda i, j, k: (0, j)),    # bias tile
                ],
                out_specs=pl.BlockSpec((tb, tn), lambda i, j, k: (i, j)),
                scratch_shapes=[pltpu.VMEM((tb, tn), jnp.float32)],
            ),
            compiler_params=pltpu.CompilerParams(
                dimension_semantics=("parallel", "parallel", "arbitrary")),
        )(x, w, b2)

    if (Bp, Np) != (B, Dout):
        out = out[:B, :Dout]
    return out


if __name__ == "__main__":
    # Case 1: small module-sized demo (Dout=64 < 128 exercises N padding +
    # the single-K fast path).
    key = jax.random.PRNGKey(0)
    kx, kw, kb = jax.random.split(key, 3)
    batch, dim_in, dim_out = 16, 32, 64
    x = jax.random.normal(kx, (batch, dim_in), dtype=jnp.float32)
    bound = 1.0 / jnp.sqrt(dim_in)          # torch.nn.Linear default init bound
    w = jax.random.uniform(kw, (dim_out, dim_in), jnp.float32, -bound, bound)
    b = jax.random.uniform(kb, (dim_out,), jnp.float32, -bound, bound)

    out = jax.block_until_ready(fc_layer(x, w, b))
    ref = jnp.maximum(x @ w.T + b, 0.0)
    assert out.shape == (batch, dim_out)
    assert jnp.allclose(out, ref, atol=1e-4, rtol=1e-4)

    # Case 2: non-divisible shapes, single-K fast path (Din=1024 fits one tile).
    k2x, k2w, k2b = jax.random.split(jax.random.PRNGKey(1), 3)
    B2, Din2, Dout2 = 300, 1024, 200
    x2 = jax.random.normal(k2x, (B2, Din2), dtype=jnp.float32)
    bound2 = 1.0 / jnp.sqrt(Din2)
    w2 = jax.random.uniform(k2w, (Dout2, Din2), jnp.float32, -bound2, bound2)
    b2 = jax.random.uniform(k2b, (Dout2,), jnp.float32, -bound2, bound2)

    out2 = jax.block_until_ready(fc_layer(x2, w2, b2))
    ref2 = jnp.maximum(x2 @ w2.T + b2, 0.0)
    assert out2.shape == (B2, Dout2)
    assert jnp.allclose(out2, ref2, atol=1e-4, rtol=1e-4)

    # Case 3: Din > tile_k exercises the K-tiled accumulator path.
    k3x, k3w, k3b = jax.random.split(jax.random.PRNGKey(2), 3)
    B3, Din3, Dout3 = 320, 2304, 384
    x3 = jax.random.normal(k3x, (B3, Din3), dtype=jnp.float32)
    bound3 = 1.0 / jnp.sqrt(Din3)
    w3 = jax.random.uniform(k3w, (Dout3, Din3), jnp.float32, -bound3, bound3)
    b3 = jax.random.uniform(k3b, (Dout3,), jnp.float32, -bound3, bound3)

    out3 = jax.block_until_ready(fc_layer(x3, w3, b3))
    ref3 = jnp.maximum(x3 @ w3.T + b3, 0.0)
    assert out3.shape == (B3, Dout3)
    assert jnp.allclose(out3, ref3, atol=1e-3, rtol=1e-3)

    print("KERNEL_OK")
</pallas_src>

<mosaic_0001>
module attributes {stable_mosaic.version = 11 : i64} {
  func.func @_fc_relu_kernel_noacc(%arg0: i32, %arg1: i32, %arg2: memref<16x128xf32, #tpu.memory_space<vmem>>, %arg3: memref<128x128xf32, #tpu.memory_space<vmem>>, %arg4: memref<1x128xf32, #tpu.memory_space<vmem>>, %arg5: memref<16x128xf32, #tpu.memory_space<vmem>>) attributes {dimension_semantics = [#tpu.dimension_semantics<parallel>, #tpu.dimension_semantics<parallel>], iteration_bounds = array<i64: 1, 1>, scalar_prefetch = 0 : i64, scratch_operands = 0 : i64, tpu.core_type = #tpu.core_type<tc>, window_params = [{transform_indices = @transform_0, window_bounds = array<i64: 16, 128>}, {transform_indices = @transform_1, window_bounds = array<i64: 128, 128>}, {transform_indices = @transform_2, window_bounds = array<i64: 1, 128>}, {transform_indices = @transform_3, window_bounds = array<i64: 16, 128>}]} {
    %c0 = arith.constant 0 : index
    %c0_0 = arith.constant 0 : index
    %0 = vector.load %arg2[%c0, %c0_0] : memref<16x128xf32, #tpu.memory_space<vmem>>, vector<16x128xf32>
    %c0_1 = arith.constant 0 : index
    %c0_2 = arith.constant 0 : index
    %1 = vector.load %arg3[%c0_1, %c0_2] : memref<128x128xf32, #tpu.memory_space<vmem>>, vector<128x128xf32>
    %cst = arith.constant dense<0.000000e+00> : vector<16x128xf32>
    %2 = tpu.matmul %0, %1, %cst {dimension_numbers = #tpu.dot_dimension_numbers<[1], [1], [0], [0], [0, 0, 1, 0], [], []>} : vector<16x128xf32>, vector<128x128xf32>, vector<16x128xf32> -> vector<16x128xf32>
    %c0_3 = arith.constant 0 : index
    %c0_4 = arith.constant 0 : index
    %3 = vector.load %arg4[%c0_3, %c0_4] : memref<1x128xf32, #tpu.memory_space<vmem>>, vector<1x128xf32>
    %4 = vector.broadcast %3 : vector<1x128xf32> to vector<16x128xf32>
    %5 = arith.addf %2, %4 : vector<16x128xf32>
    %cst_5 = arith.constant 0.000000e+00 : f32
    %6 = vector.broadcast %cst_5 : f32 to vector<16x128xf32>
    %7 = arith.maximumf %5, %6 : vector<16x128xf32>
    %c0_6 = arith.constant 0 : index
    %c0_7 = arith.constant 0 : index
    %8 = vector.load %arg5[%c0_6, %c0_7] : memref<16x128xf32, #tpu.memory_space<vmem>>, vector<16x128xf32>
    tpu.vector_store %arg5[%c0_6, %c0_7], %7 {strides = array<i32>} : memref<16x128xf32, #tpu.memory_space<vmem>>, vector<16x128xf32>,
    return
  }
  func.func @transform_0(%arg0: i32, %arg1: i32) -> (i32, i32) {
    %c0_i32 = arith.constant 0 : i32
    %c0_i32_0 = arith.constant 0 : i32
    return %arg0, %c0_i32 : i32, i32
  }
  func.func @transform_1(%arg0: i32, %arg1: i32) -> (i32, i32) {
    %c0_i32 = arith.constant 0 : i32
    %c0_i32_0 = arith.constant 0 : i32
    return %arg1, %c0_i32 : i32, i32
  }
  func.func @transform_2(%arg0: i32, %arg1: i32) -> (i32, i32) {
    %c0_i32 = arith.constant 0 : i32
    %c0_i32_0 = arith.constant 0 : i32
    return %c0_i32, %arg1 : i32, i32
  }
  func.func @transform_3(%arg0: i32, %arg1: i32) -> (i32, i32) {
    %c0_i32 = arith.constant 0 : i32
    return %arg0, %arg1 : i32, i32
  }
}

</mosaic_0001>

<llo_original>
// kernel: tpu_custom_call.1
$region0: #{tpu_custom_call.1}
  #allocation0 [shape = 'u32[]', space=smem, size = 0x4, offset = 0x4, fixed_abs, tag = 'smem constant byte address 0x4 - core index']
  #allocation1 [shape = 'u32[72,128]{1,0:T(1,128)}', space=vmem, size = 0x9000, scoped, tag = 'internal scratch']
  %s0 = inlined_call_operand.hbm [shape: f32[16,128], index: 0, kind: input, shape index: {}]
  %s1 = inlined_call_operand.hbm [shape: f32[128,128], index: 1, kind: input, shape index: {}]
  %s2 = inlined_call_operand.vmem [shape: f32[1,128], index: 2, kind: input, shape index: {}]
  %s3 = inlined_call_operand.hbm [shape: f32[16,128], index: 3, kind: output, shape index: {}]
  %s4 = sld [smem:[#allocation0]]
  $region30: #{tpu_custom_call.1} parent=0
    _
  %s6 = ssub.s32 1, %s4
  %s7 = scalar_select 0, %s6, %s4
  $region1: #{tpu_custom_call.1} parent=0
    #allocation2 [shape = 'u8[8192]{0}', space=vmem, size = 0x2000, scoped, tag = 'input window, operand 0, single buffered']
    #allocation3 [shape = 's32[1]{0}', space=sflag, size = 0x4, scoped, tag = 'scoped memory for tpu_custom_call.1']
    #allocation4 [shape = 's32[1]{0}', space=sflag, size = 0x4, scoped, tag = 'scoped memory for tpu_custom_call.1']
    #allocation5 [shape = 'u8[65536]{0}', space=vmem, size = 0x10000, scoped, tag = 'input window, operand 1, single buffered']
    #allocation6 [shape = 's32[1]{0}', space=sflag, size = 0x4, scoped, tag = 'scoped memory for tpu_custom_call.1']
    #allocation7 [shape = 'u8[8192]{0}', space=vmem, size = 0x2000, scoped, tag = 'output window, operand 0, single buffered']
    %8 = vsyncpa [#allocation3], 0
    %9 = vsyncpa [#allocation6], 0
    %10 = vsyncpa [#allocation4], 0
    // Predicated region
    $region2: #{tpu_custom_call.1} parent=1 // pred_check
      _
    $region3: #{tpu_custom_call.1} parent=1 // pred_check_branch
      %12 = sbr.rel (0) target = $region5
    $region4: #{tpu_custom_call.1} parent=1 // pred_region
      %14 = vsyncadd [#allocation3], 0
      %s15 = sshll.u32 %s0, 4
      %s16 = int_to_ptr.hbm [resolvable:$true] %s15
      %s17 = sshll.u32 [#allocation2], 4
      %s18 = int_to_ptr.vmem [resolvable:$true] %s17
      %23 = dma.hbm_to_vmem [thread:$0]  %s16, 256, %s18, [#allocation3], 128, 128, 8
    $region5: #{tpu_custom_call.1} parent=1 // pred_fallthru
      _
    // Predicated region
    $region6: #{tpu_custom_call.1} parent=1 // pred_check
      _
    $region7: #{tpu_custom_call.1} parent=1 // pred_check_branch
      %25 = sbr.rel (0) target = $region9
    $region8: #{tpu_custom_call.1} parent=1 // pred_region
      %27 = vsyncadd [#allocation6], 0
      %s28 = sshll.u32 %s1, 4
      %s29 = int_to_ptr.hbm [resolvable:$true] %s28
      %s30 = sshll.u32 [#allocation5], 4
      %s31 = int_to_ptr.vmem [resolvable:$true] %s30
      %36 = dma.hbm_to_vmem [thread:$0]  %s29, 2048, %s31, [#allocation6], 128, 128, 8
    $region9: #{tpu_custom_call.1} parent=1 // pred_fallthru
      _
    // Predicated region
    $region10: #{tpu_custom_call.1} parent=1 // pred_check
      _
    $region11: #{tpu_custom_call.1} parent=1 // pred_check_branch
      %38 = sbr.rel (0) target = $region13
    $region12: #{tpu_custom_call.1} parent=1 // pred_region
      _
    $region13: #{tpu_custom_call.1} parent=1 // pred_fallthru
      _
    // Predicated region
    $region14: #{tpu_custom_call.1} parent=1 // pred_check
      _
    $region15: #{tpu_custom_call.1} parent=1 // pred_check_branch
      %40 = sbr.rel (0) target = $region17
    $region16: #{tpu_custom_call.1} parent=1 // pred_region
      %42 = dma.done [#allocation3], 256
    $region17: #{tpu_custom_call.1} parent=1 // pred_fallthru
      _
    // Predicated region
    $region18: #{tpu_custom_call.1} parent=1 // pred_check
      _
    $region19: #{tpu_custom_call.1} parent=1 // pred_check_branch
      %44 = sbr.rel (0) target = $region21
    $region20: #{tpu_custom_call.1} parent=1 // pred_region
      %46 = dma.done [#allocation6], 2048
    $region21: #{tpu_custom_call.1} parent=1 // pred_fallthru
      _
    %v47 = vld [vmem:[#allocation2] sm:$0xff]
    %v48 = vld [vmem:[#allocation2 + $0x8] sm:$0xff]
    %v49 = vld [vmem:[#allocation5] sm:$0xff]
    %v50 = vld [vmem:[#allocation5 + $0x8] sm:$0xff]
    %v51 = vld [vmem:[#allocation5 + $0x10] sm:$0xff]
    %v52 = vld [vmem:[#allocation5 + $0x18] sm:$0xff]
    %v53 = vld [vmem:[#allocation5 + $0x20] sm:$0xff]
    %v54 = vld [vmem:[#allocation5 + $0x28] sm:$0xff]
    %v55 = vld [vmem:[#allocation5 + $0x30] sm:$0xff]
    %v56 = vld [vmem:[#allocation5 + $0x38] sm:$0xff]
    %v57 = vld [vmem:[#allocation5 + $0x40] sm:$0xff]
    %v58 = vld [vmem:[#allocation5 + $0x48] sm:$0xff]
    %v59 = vld [vmem:[#allocation5 + $0x50] sm:$0xff]
    %v60 = vld [vmem:[#allocation5 + $0x58] sm:$0xff]
    %v61 = vld [vmem:[#allocation5 + $0x60] sm:$0xff]
    %v62 = vld [vmem:[#allocation5 + $0x68] sm:$0xff]
    %v63 = vld [vmem:[#allocation5 + $0x70] sm:$0xff]
    %v64 = vld [vmem:[#allocation5 + $0x78] sm:$0xff]
    %v65 = vld [vmem:[%s2] sm:$0x1]
    %v67 = vperm.slane %v65, 0
    %69 = vmatpush.xpose.msra.mxu0 %v64
    %70 = vmatpush.xpose.msra.mxu0 %v63
    %71 = vmatpush.xpose.msra.mxu0 %v62
    %72 = vmatpush.xpose.msra.mxu0 %v61
    %73 = vmatpush.xpose.msra.mxu0 %v60
    %74 = vmatpush.xpose.msra.mxu0 %v59
    %75 = vmatpush.xpose.msra.mxu0 %v58
    %76 = vmatpush.xpose.msra.mxu0 %v57
    %77 = vmatpush.xpose.msra.mxu0 %v56
    %78 = vmatpush.xpose.msra.mxu0 %v55
    %79 = vmatpush.xpose.msra.mxu0 %v54
    %80 = vmatpush.xpose.msra.mxu0 %v53
    %81 = vmatpush.xpose.msra.mxu0 %v52
    %82 = vmatpush.xpose.msra.mxu0 %v51
    %83 = vmatpush.xpose.msra.mxu0 %v50
    %84 = vmatpush.xpose.msra.mxu0 %v49
    %85 = vmatmul.f32.gmra.mxu0 %v47
    %v86 = vpop.f32.mrf.mxu0
    %v87 = vadd.f32 %v67, %v86
    %88 = vmatmul.f32.gmra.mxu0 %v48
    %v89 = vpop.f32.mrf.mxu0
    %v90 = vadd.f32 %v67, %v89
    %91 = vdwg.mxu0
    %v92 = vmax.f32 %v87, 0.0
    %v93 = vmax.f32 %v90, 0.0
    %94 = vst [vmem:[#allocation7] sm:$0xff] %v92
    %95 = vst [vmem:[#allocation7 + $0x8] sm:$0xff] %v93
    // Predicated region
    $region22: #{tpu_custom_call.1} parent=1 // pred_check
      _
    $region23: #{tpu_custom_call.1} parent=1 // pred_check_branch
      %97 = sbr.rel (0) target = $region25
    $region24: #{tpu_custom_call.1} parent=1 // pred_region
      %99 = vsyncadd [#allocation4], 0
      %s100 = sshll.u32 [#allocation7], 4
      %s101 = int_to_ptr.vmem [resolvable:$true] %s100
      %s102 = sshll.u32 %s3, 4
      %s103 = int_to_ptr.hbm [resolvable:$true] %s102
      %108 = dma.vmem_to_hbm [thread:$0]  %s101, 256, %s103, [#allocation4], 128, 128, 8
    $region25: #{tpu_custom_call.1} parent=1 // pred_fallthru
      _
    // Predicated region
    $region26: #{tpu_custom_call.1} parent=1 // pred_check
      _
    $region27: #{tpu_custom_call.1} parent=1 // pred_check_branch
      %110 = sbr.rel (0) target = $region29
    $region28: #{tpu_custom_call.1} parent=1 // pred_region
      %112 = dma.done [#allocation4], 256
    $region29: #{tpu_custom_call.1} parent=1 // pred_fallthru
      _
    %113 = vsyncpa [#allocation3], 1
    %114 = vsyncpa [#allocation6], 1
    %115 = vsyncpa [#allocation4], 1

</llo_original>
